<compile_context>
chip_gen: v5e
topology: v5e:2x2
jax: 0.10.0
libtpu: 0.0.40
codegen_flags: <defaults>
</compile_context>

<pallas_src>
import jax
import jax.numpy as jnp
from jax.experimental import pallas as pl
from jax.experimental.pallas import tpu as pltpu

ECG_IN = 128    # flattened ECG feature length
TAB_IN = 16     # tabular feature count
ECG_EMB = 64
TAB_EMB = 32
HID = 64
NCLS = 5
OUT_PAD = 128   # lane-dense padded logits width (>= NCLS, multiple of 128)


def early_fusion_kernel(x_ref, w_enc_ref, b_enc_ref, w1_ref, b1_ref,
                        w2_ref, b2_ref, out_ref):
    # Fused encoders: [e | t] = relu([x_ecg | x_tab] @ blockdiag(W_ecg, W_tab) + [b_ecg | b_tab])
    et = jnp.dot(x_ref[...], w_enc_ref[...],
                 preferred_element_type=jnp.float32) + b_enc_ref[...]
    et = jnp.maximum(et, 0.0)                                     # (tb, 96) f32

    # Classifier hidden: relu(cat([e, t]) @ W1 + b1)  (concat-free: W1 is the stacked weight)
    h = jnp.dot(et.astype(jnp.bfloat16), w1_ref[...],
                preferred_element_type=jnp.float32) + b1_ref[...]
    h = jnp.maximum(h, 0.0)                                       # (tb, 64) f32

    # Final Linear(64, 5) padded to 128 lanes -> unmasked, lane-dense store.
    out_ref[...] = (jnp.dot(h.astype(jnp.bfloat16), w2_ref[...],
                            preferred_element_type=jnp.float32)
                    + b2_ref[...])                                # (tb, 128) f32


def early_fusion(x_ecg, x_tab, params, *, tile_b=512):
    (w_ecg, b_ecg, w_tab, b_tab, w1e, w1t, b1, w2, b2) = params
    B = x_ecg.shape[0]

    # ---- tiny one-time weight packing (outside the kernel) -----------------
    # block-diagonal encoder weight so cat([x_ecg, x_tab]) @ W_enc == [enc_e | enc_t]
    w_enc = jnp.zeros((ECG_IN + TAB_IN, ECG_EMB + TAB_EMB), jnp.float32)
    w_enc = w_enc.at[:ECG_IN, :ECG_EMB].set(w_ecg)
    w_enc = w_enc.at[ECG_IN:, ECG_EMB:].set(w_tab)
    b_enc = jnp.concatenate([b_ecg, b_tab], axis=1)               # (1, 96)
    w1 = jnp.concatenate([w1e, w1t], axis=0)                      # (96, 64)
    # pad final layer to 128 output lanes (zeros beyond NCLS)
    w2p = jnp.zeros((HID, OUT_PAD), jnp.float32).at[:, :NCLS].set(w2)
    b2p = jnp.zeros((1, OUT_PAD), jnp.float32).at[:, :NCLS].set(b2)

    # bf16 for activations / matmul weights (MXU native), f32 biases + accumulation
    x = jnp.concatenate([x_ecg, x_tab], axis=1).astype(jnp.bfloat16)   # (B, 144)
    w_enc = w_enc.astype(jnp.bfloat16)
    w1 = w1.astype(jnp.bfloat16)
    w2p = w2p.astype(jnp.bfloat16)

    # ---- batch tiling -------------------------------------------------------
    if B <= tile_b:
        tb, b_pad = B, B                      # single tile: block == full array dim (legal)
    else:
        tb = tile_b                           # multiple of 16 -> legal bf16 sublane tile
        b_pad = pl.cdiv(B, tb) * tb
        x = jnp.pad(x, ((0, b_pad - B), (0, 0)))
    nb = b_pad // tb

    const2d = lambda a: pl.BlockSpec(a.shape, lambda i: (0, 0))   # VMEM-resident weights

    out = pl.pallas_call(
        early_fusion_kernel,
        out_shape=jax.ShapeDtypeStruct((b_pad, OUT_PAD), jnp.float32),
        grid=(nb,),
        in_specs=[
            pl.BlockSpec((tb, ECG_IN + TAB_IN), lambda i: (i, 0)),   # activation tiles pipeline
            const2d(w_enc), const2d(b_enc),
            const2d(w1), const2d(b1),
            const2d(w2p), const2d(b2p),
        ],
        out_specs=pl.BlockSpec((tb, OUT_PAD), lambda i: (i, 0)),
        compiler_params=pltpu.CompilerParams(
            dimension_semantics=("parallel",)),    # megacore split on v7x, harmless elsewhere
    )(x, w_enc, b_enc, w1, b1, w2p, b2p)

    logits = out[:B, :NCLS]
    return jnp.squeeze(logits)    # torch .squeeze() semantics


def init_params(key):
    ks = jax.random.split(key, 9)
    scale = 0.05
    w_ecg = scale * jax.random.normal(ks[0], (ECG_IN, ECG_EMB), jnp.float32)
    b_ecg = scale * jax.random.normal(ks[1], (1, ECG_EMB), jnp.float32)
    w_tab = scale * jax.random.normal(ks[2], (TAB_IN, TAB_EMB), jnp.float32)
    b_tab = scale * jax.random.normal(ks[3], (1, TAB_EMB), jnp.float32)
    w1e = scale * jax.random.normal(ks[4], (ECG_EMB, HID), jnp.float32)
    w1t = scale * jax.random.normal(ks[5], (TAB_EMB, HID), jnp.float32)
    b1 = scale * jax.random.normal(ks[6], (1, HID), jnp.float32)
    w2 = scale * jax.random.normal(ks[7], (HID, NCLS), jnp.float32)
    b2 = scale * jax.random.normal(ks[8], (1, NCLS), jnp.float32)
    return (w_ecg, b_ecg, w_tab, b_tab, w1e, w1t, b1, w2, b2)


def reference(x_ecg, x_tab, params):
    # Pure f32 reference mirroring the PyTorch module semantics.
    (w_ecg, b_ecg, w_tab, b_tab, w1e, w1t, b1, w2, b2) = params
    e = jnp.maximum(x_ecg @ w_ecg + b_ecg, 0.0)
    t = jnp.maximum(x_tab @ w_tab + b_tab, 0.0)
    fused = jnp.concatenate([e, t], axis=1)
    w1 = jnp.concatenate([w1e, w1t], axis=0)
    h = jnp.maximum(fused @ w1 + b1, 0.0)
    return jnp.squeeze(h @ w2 + b2)


if __name__ == "__main__":
    key = jax.random.PRNGKey(0)
    k_ecg, k_tab, k_par, k_ecg2, k_tab2 = jax.random.split(key, 5)
    params = init_params(k_par)

    # --- small-batch case (single tile, block == full batch dim) ------------
    B = 2
    x_ecg = jax.random.normal(k_ecg, (B, ECG_IN), jnp.float32)
    x_tab = jax.random.normal(k_tab, (B, TAB_IN), jnp.float32)
    out = jax.block_until_ready(early_fusion(x_ecg, x_tab, params))
    ref = reference(x_ecg, x_tab, params)
    assert out.shape == (B, NCLS)
    assert jnp.allclose(out, ref, atol=3e-2, rtol=3e-2), "small-batch mismatch"

    # --- larger batch exercising the tiled / padded pipelined path ----------
    B2 = 1000
    x_ecg2 = jax.random.normal(k_ecg2, (B2, ECG_IN), jnp.float32)
    x_tab2 = jax.random.normal(k_tab2, (B2, TAB_IN), jnp.float32)
    out2 = jax.block_until_ready(early_fusion(x_ecg2, x_tab2, params, tile_b=256))
    ref2 = reference(x_ecg2, x_tab2, params)
    assert out2.shape == (B2, NCLS)
    assert jnp.allclose(out2, ref2, atol=3e-2, rtol=3e-2), "tiled-batch mismatch"

    print("KERNEL_OK")
</pallas_src>

<mosaic_0001>
module attributes {stable_mosaic.version = 11 : i64} {
  func.func @early_fusion_kernel(%arg0: i32, %arg1: memref<2x144xbf16, #tpu.memory_space<vmem>>, %arg2: memref<144x96xbf16, #tpu.memory_space<vmem>>, %arg3: memref<1x96xf32, #tpu.memory_space<vmem>>, %arg4: memref<96x64xbf16, #tpu.memory_space<vmem>>, %arg5: memref<1x64xf32, #tpu.memory_space<vmem>>, %arg6: memref<64x128xbf16, #tpu.memory_space<vmem>>, %arg7: memref<1x128xf32, #tpu.memory_space<vmem>>, %arg8: memref<2x128xf32, #tpu.memory_space<vmem>>) attributes {dimension_semantics = [#tpu.dimension_semantics<parallel>], iteration_bounds = array<i64: 1>, scalar_prefetch = 0 : i64, scratch_operands = 0 : i64, tpu.core_type = #tpu.core_type<tc>, window_params = [{transform_indices = @transform_0, window_bounds = array<i64: 2, 144>}, {pipeline_mode = #tpu.pipeline_mode<synchronous>, transform_indices = @transform_1, window_bounds = array<i64: 144, 96>}, {pipeline_mode = #tpu.pipeline_mode<synchronous>, transform_indices = @transform_2, window_bounds = array<i64: 1, 96>}, {pipeline_mode = #tpu.pipeline_mode<synchronous>, transform_indices = @transform_3, window_bounds = array<i64: 96, 64>}, {pipeline_mode = #tpu.pipeline_mode<synchronous>, transform_indices = @transform_4, window_bounds = array<i64: 1, 64>}, {pipeline_mode = #tpu.pipeline_mode<synchronous>, transform_indices = @transform_5, window_bounds = array<i64: 64, 128>}, {pipeline_mode = #tpu.pipeline_mode<synchronous>, transform_indices = @transform_6, window_bounds = array<i64: 1, 128>}, {transform_indices = @transform_7, window_bounds = array<i64: 2, 128>}]} {
    %c0 = arith.constant 0 : index
    %c0_0 = arith.constant 0 : index
    %0 = vector.load %arg1[%c0, %c0_0] : memref<2x144xbf16, #tpu.memory_space<vmem>>, vector<2x144xbf16>
    %c0_1 = arith.constant 0 : index
    %c0_2 = arith.constant 0 : index
    %1 = vector.load %arg2[%c0_1, %c0_2] : memref<144x96xbf16, #tpu.memory_space<vmem>>, vector<144x96xbf16>
    %cst = arith.constant dense<0.000000e+00> : vector<2x96xf32>
    %2 = tpu.matmul %0, %1, %cst {dimension_numbers = #tpu.dot_dimension_numbers<[1], [0], [0], [1], [0, 0, 1, 1], [], []>} : vector<2x144xbf16>, vector<144x96xbf16>, vector<2x96xf32> -> vector<2x96xf32>
    %c0_3 = arith.constant 0 : index
    %c0_4 = arith.constant 0 : index
    %3 = vector.load %arg3[%c0_3, %c0_4] : memref<1x96xf32, #tpu.memory_space<vmem>>, vector<1x96xf32>
    %4 = vector.broadcast %3 : vector<1x96xf32> to vector<2x96xf32>
    %5 = arith.addf %2, %4 : vector<2x96xf32>
    %cst_5 = arith.constant 0.000000e+00 : f32
    %6 = vector.broadcast %cst_5 : f32 to vector<2x96xf32>
    %7 = arith.maximumf %5, %6 : vector<2x96xf32>
    %8 = arith.truncf %7 : vector<2x96xf32> to vector<2x96xbf16>
    %c0_6 = arith.constant 0 : index
    %c0_7 = arith.constant 0 : index
    %9 = vector.load %arg4[%c0_6, %c0_7] : memref<96x64xbf16, #tpu.memory_space<vmem>>, vector<96x64xbf16>
    %cst_8 = arith.constant dense<0.000000e+00> : vector<2x64xf32>
    %10 = tpu.matmul %8, %9, %cst_8 {dimension_numbers = #tpu.dot_dimension_numbers<[1], [0], [0], [1], [0, 0, 1, 1], [], []>} : vector<2x96xbf16>, vector<96x64xbf16>, vector<2x64xf32> -> vector<2x64xf32>
    %c0_9 = arith.constant 0 : index
    %c0_10 = arith.constant 0 : index
    %11 = vector.load %arg5[%c0_9, %c0_10] : memref<1x64xf32, #tpu.memory_space<vmem>>, vector<1x64xf32>
    %12 = vector.broadcast %11 : vector<1x64xf32> to vector<2x64xf32>
    %13 = arith.addf %10, %12 : vector<2x64xf32>
    %cst_11 = arith.constant 0.000000e+00 : f32
    %14 = vector.broadcast %cst_11 : f32 to vector<2x64xf32>
    %15 = arith.maximumf %13, %14 : vector<2x64xf32>
    %16 = arith.truncf %15 : vector<2x64xf32> to vector<2x64xbf16>
    %c0_12 = arith.constant 0 : index
    %c0_13 = arith.constant 0 : index
    %17 = vector.load %arg6[%c0_12, %c0_13] : memref<64x128xbf16, #tpu.memory_space<vmem>>, vector<64x128xbf16>
    %cst_14 = arith.constant dense<0.000000e+00> : vector<2x128xf32>
    %18 = tpu.matmul %16, %17, %cst_14 {dimension_numbers = #tpu.dot_dimension_numbers<[1], [0], [0], [1], [0, 0, 1, 1], [], []>} : vector<2x64xbf16>, vector<64x128xbf16>, vector<2x128xf32> -> vector<2x128xf32>
    %c0_15 = arith.constant 0 : index
    %c0_16 = arith.constant 0 : index
    %19 = vector.load %arg7[%c0_15, %c0_16] : memref<1x128xf32, #tpu.memory_space<vmem>>, vector<1x128xf32>
    %20 = vector.broadcast %19 : vector<1x128xf32> to vector<2x128xf32>
    %21 = arith.addf %18, %20 : vector<2x128xf32>
    %c0_17 = arith.constant 0 : index
    %c0_18 = arith.constant 0 : index
    %22 = vector.load %arg8[%c0_17, %c0_18] : memref<2x128xf32, #tpu.memory_space<vmem>>, vector<2x128xf32>
    tpu.vector_store %arg8[%c0_17, %c0_18], %21 {strides = array<i32>} : memref<2x128xf32, #tpu.memory_space<vmem>>, vector<2x128xf32>,
    return
  }
  func.func @transform_0(%arg0: i32) -> (i32, i32) {
    %c0_i32 = arith.constant 0 : i32
    %c0_i32_0 = arith.constant 0 : i32
    return %arg0, %c0_i32 : i32, i32
  }
  func.func @transform_1(%arg0: i32) -> (i32, i32) {
    %c0_i32 = arith.constant 0 : i32
    %c0_i32_0 = arith.constant 0 : i32
    %c0_i32_1 = arith.constant 0 : i32
    return %c0_i32, %c0_i32_0 : i32, i32
  }
  func.func @transform_2(%arg0: i32) -> (i32, i32) {
    %c0_i32 = arith.constant 0 : i32
    %c0_i32_0 = arith.constant 0 : i32
    %c0_i32_1 = arith.constant 0 : i32
    return %c0_i32, %c0_i32_0 : i32, i32
  }
  func.func @transform_3(%arg0: i32) -> (i32, i32) {
    %c0_i32 = arith.constant 0 : i32
    %c0_i32_0 = arith.constant 0 : i32
    %c0_i32_1 = arith.constant 0 : i32
    return %c0_i32, %c0_i32_0 : i32, i32
  }
  func.func @transform_4(%arg0: i32) -> (i32, i32) {
    %c0_i32 = arith.constant 0 : i32
    %c0_i32_0 = arith.constant 0 : i32
    %c0_i32_1 = arith.constant 0 : i32
    return %c0_i32, %c0_i32_0 : i32, i32
  }
  func.func @transform_5(%arg0: i32) -> (i32, i32) {
    %c0_i32 = arith.constant 0 : i32
    %c0_i32_0 = arith.constant 0 : i32
    %c0_i32_1 = arith.constant 0 : i32
    return %c0_i32, %c0_i32_0 : i32, i32
  }
  func.func @transform_6(%arg0: i32) -> (i32, i32) {
    %c0_i32 = arith.constant 0 : i32
    %c0_i32_0 = arith.constant 0 : i32
    %c0_i32_1 = arith.constant 0 : i32
    return %c0_i32, %c0_i32_0 : i32, i32
  }
  func.func @transform_7(%arg0: i32) -> (i32, i32) {
    %c0_i32 = arith.constant 0 : i32
    %c0_i32_0 = arith.constant 0 : i32
    return %arg0, %c0_i32 : i32, i32
  }
}

</mosaic_0001>

<llo_original>
// kernel: tpu_custom_call.1
$region0: #{tpu_custom_call.1}
  #allocation0 [shape = 'u32[]', space=smem, size = 0x4, offset = 0x4, fixed_abs, tag = 'smem constant byte address 0x4 - core index']
  #allocation1 [shape = 'u32[72,128]{1,0:T(1,128)}', space=vmem, size = 0x9000, scoped, tag = 'internal scratch']
  %s0 = inlined_call_operand.vmem [shape: bf16[2,144], index: 0, kind: input, shape index: {}]
  %s1 = inlined_call_operand.vmem [shape: bf16[144,96], index: 1, kind: input, shape index: {}]
  %s2 = inlined_call_operand.vmem [shape: f32[1,96], index: 2, kind: input, shape index: {}]
  %s3 = inlined_call_operand.vmem [shape: bf16[96,64], index: 3, kind: input, shape index: {}]
  %s4 = inlined_call_operand.vmem [shape: f32[1,64], index: 4, kind: input, shape index: {}]
  %s5 = inlined_call_operand.hbm [shape: bf16[64,128], index: 5, kind: input, shape index: {}]
  %s6 = inlined_call_operand.vmem [shape: f32[1,128], index: 6, kind: input, shape index: {}]
  %s7 = inlined_call_operand.hbm [shape: f32[2,128], index: 7, kind: output, shape index: {}]
  %s8 = sld [smem:[#allocation0]]
  $region42: #{tpu_custom_call.1} parent=0
    _
  %s10 = ssub.s32 1, %s8
  %s11 = scalar_select 0, %s10, %s8
  $region1: #{tpu_custom_call.1} parent=0
    #allocation2 [shape = 'u8[16384]{0}', space=vmem, size = 0x4000, scoped, tag = 'input window, operand 5, single buffered']
    #allocation3 [shape = 's32[1]{0}', space=sflag, size = 0x4, scoped, tag = 'scoped memory for tpu_custom_call.1']
    #allocation4 [shape = 's32[1]{0}', space=sflag, size = 0x4, scoped, tag = 'scoped memory for tpu_custom_call.1']
    #allocation5 [shape = 'u8[1024]{0}', space=vmem, size = 0x400, scoped, tag = 'output window, operand 0, single buffered']
    %12 = vsyncpa [#allocation3], 0
    %13 = vsyncpa [#allocation4], 0
    // Predicated region
    $region2: #{tpu_custom_call.1} parent=1 // pred_check
      _
    $region3: #{tpu_custom_call.1} parent=1 // pred_check_branch
      %15 = sbr.rel (0) target = $region5
    $region4: #{tpu_custom_call.1} parent=1 // pred_region
      _
    $region5: #{tpu_custom_call.1} parent=1 // pred_fallthru
      _
    // Predicated region
    $region6: #{tpu_custom_call.1} parent=1 // pred_check
      _
    $region7: #{tpu_custom_call.1} parent=1 // pred_check_branch
      %17 = sbr.rel (0) target = $region9
    $region8: #{tpu_custom_call.1} parent=1 // pred_region
      _
    $region9: #{tpu_custom_call.1} parent=1 // pred_fallthru
      _
    // Predicated region
    $region10: #{tpu_custom_call.1} parent=1 // pred_check
      _
    $region11: #{tpu_custom_call.1} parent=1 // pred_check_branch
      %19 = sbr.rel (0) target = $region13
    $region12: #{tpu_custom_call.1} parent=1 // pred_region
      _
    $region13: #{tpu_custom_call.1} parent=1 // pred_fallthru
      _
    // Predicated region
    $region14: #{tpu_custom_call.1} parent=1 // pred_check
      _
    $region15: #{tpu_custom_call.1} parent=1 // pred_check_branch
      %21 = sbr.rel (0) target = $region17
    $region16: #{tpu_custom_call.1} parent=1 // pred_region
      _
    $region17: #{tpu_custom_call.1} parent=1 // pred_fallthru
      _
    // Predicated region
    $region18: #{tpu_custom_call.1} parent=1 // pred_check
      _
    $region19: #{tpu_custom_call.1} parent=1 // pred_check_branch
      %23 = sbr.rel (0) target = $region21
    $region20: #{tpu_custom_call.1} parent=1 // pred_region
      _
    $region21: #{tpu_custom_call.1} parent=1 // pred_fallthru
      _
    // Predicated region
    $region22: #{tpu_custom_call.1} parent=1 // pred_check
      _
    $region23: #{tpu_custom_call.1} parent=1 // pred_check_branch
      %25 = sbr.rel (0) target = $region25
    $region24: #{tpu_custom_call.1} parent=1 // pred_region
      %27 = vsyncadd [#allocation3], 0
      %s28 = sshll.u32 %s5, 4
      %s29 = int_to_ptr.hbm [resolvable:$true] %s28
      %s30 = sshll.u32 [#allocation2], 4
      %s31 = int_to_ptr.vmem [resolvable:$true] %s30
      %36 = dma.hbm_to_vmem [thread:$0]  %s29, 512, %s31, [#allocation3], 64, 64, 4
    $region25: #{tpu_custom_call.1} parent=1 // pred_fallthru
      _
    // Predicated region
    $region26: #{tpu_custom_call.1} parent=1 // pred_check
      _
    $region27: #{tpu_custom_call.1} parent=1 // pred_check_branch
      %38 = sbr.rel (0) target = $region29
    $region28: #{tpu_custom_call.1} parent=1 // pred_region
      _
    $region29: #{tpu_custom_call.1} parent=1 // pred_fallthru
      _
    // Predicated region
    $region30: #{tpu_custom_call.1} parent=1 // pred_check
      _
    $region31: #{tpu_custom_call.1} parent=1 // pred_check_branch
      %40 = sbr.rel (0) target = $region33
    $region32: #{tpu_custom_call.1} parent=1 // pred_region
      %42 = dma.done [#allocation3], 512
    $region33: #{tpu_custom_call.1} parent=1 // pred_fallthru
      _
    %v44 = vld [vmem:[%s0] sm:$0x3]
    %v45 = vld [vmem:[%s1] sm:$0xf]
    %v46 = vld [vmem:[%s1 + $0x4] sm:$0xf]
    %v47 = vld [vmem:[%s1 + $0x8] sm:$0xf]
    %v48 = vld [vmem:[%s1 + $0xc] sm:$0xf]
    %v49 = vld [vmem:[%s1 + $0x10] sm:$0xf]
    %v50 = vld [vmem:[%s1 + $0x14] sm:$0xf]
    %v51 = vld [vmem:[%s1 + $0x18] sm:$0xf]
    %v52 = vld [vmem:[%s1 + $0x1c] sm:$0xf]
    %v53 = vld [vmem:[%s1 + $0x20] sm:$0xf]
    %v54 = vld [vmem:[%s1 + $0x24] sm:$0xf]
    %v55 = vld [vmem:[%s1 + $0x28] sm:$0xf]
    %v56 = vld [vmem:[%s1 + $0x2c] sm:$0xf]
    %v57 = vld [vmem:[%s1 + $0x30] sm:$0xf]
    %v58 = vld [vmem:[%s1 + $0x34] sm:$0xf]
    %v59 = vld [vmem:[%s1 + $0x38] sm:$0xf]
    %v60 = vld [vmem:[%s1 + $0x3c] sm:$0xf]
    %v61 = vld [vmem:[%s1 + $0x40] sm:$0xf]
    %v62 = vld [vmem:[%s1 + $0x44] sm:$0xf]
    %v63 = vld [vmem:[%s2] sm:$0x1]
    %v65 = vperm.slane %v63, 0
    %68 = vst [vmem:[#allocation1] ss:$9 sm:$0xff] %v44
    %v69 = vld [vmem:[#allocation1] sm:$0xff]
    %v70 = vld [vmem:[#allocation1 + $0x9] sm:$0xff]
    %v90 = vunpack.c.l.b16 %v45
    %v91 = vunpack.c.l.b16 %v46
    %v92 = vunpack.c.l.b16 %v47
    %v93 = vunpack.c.l.b16 %v48
    %v94 = vunpack.c.l.b16 %v49
    %v95 = vunpack.c.l.b16 %v50
    %v96 = vunpack.c.l.b16 %v51
    %v97 = vunpack.c.l.b16 %v52
    %v98 = vunpack.c.l.b16 %v53
    %v99 = vunpack.c.l.b16 %v54
    %v100 = vunpack.c.l.b16 %v55
    %v101 = vunpack.c.l.b16 %v56
    %v102 = vunpack.c.l.b16 %v57
    %v103 = vunpack.c.l.b16 %v58
    %v104 = vunpack.c.l.b16 %v59
    %v105 = vunpack.c.l.b16 %v60
    %v106 = vunpack.c.l.b16 %v61
    %v107 = vunpack.c.l.b16 %v62
    %v108 = vpack.c.b16 %v91, %v90
    %v109 = vpack.c.b16 %v93, %v92
    %v110 = vpack.c.b16 %v95, %v94
    %v111 = vpack.c.b16 %v97, %v96
    %v112 = vpack.c.b16 %v99, %v98
    %v113 = vpack.c.b16 %v101, %v100
    %v114 = vpack.c.b16 %v103, %v102
    %v115 = vpack.c.b16 %v105, %v104
    %v116 = vpack.c.b16 %v107, %v106
    %vm126 = vcmask 130048
    %v127 = vsel %vm126, %v70, 0
    %129 = vmatpush.bf16.msra.mxu0 %v115
    %130 = vmatpush.bf16.msra.mxu0 %v114
    %131 = vmatpush.bf16.msra.mxu0 %v113
    %132 = vmatpush.bf16.msra.mxu0 %v112
    %133 = vmatpush.bf16.msra.mxu0 %v111
    %134 = vmatpush.bf16.msra.mxu0 %v110
    %135 = vmatpush.bf16.msra.mxu0 %v109
    %136 = vmatpush.bf16.msra.mxu0 %v108
    %137 = vmatmul.bf16.gmra.mxu0 %v69
    %v138 = vpop.f32.mrf.mxu0
    %v139 = vadd.f32 %v65, %v138
    %v140 = vpop.f32.mrf.mxu0
    %141 = vdwg.mxu0
    %142 = vmatpush.bf16.msra.mxu0 0
    %143 = vmatpush.bf16.msra.mxu0 0
    %144 = vmatpush.bf16.msra.mxu0 0
    %145 = vmatpush.bf16.msra.mxu0 0
    %146 = vmatpush.bf16.msra.mxu0 0
    %147 = vmatpush.bf16.msra.mxu0 0
    %148 = vmatpush.bf16.msra.mxu0 0
    %149 = vmatpush.bf16.msra.mxu0 %v116
    %150 = vmatmul.bf16.gmra.mxu0 %v127
    %v151 = vpop.f32.mrf.mxu0
    %v152 = vadd.f32 %v139, %v151
    %v153 = vpop.f32.mrf.mxu0
    %154 = vdwg.mxu0
    %v155 = vmax.f32 %v152, 0.0
    %v156 = vpack.c.bf16 %v155, %v155
    %v157 = vld [vmem:[%s3] sm:$0xf]
    %v158 = vld [vmem:[%s3 + $0x4] sm:$0xf]
    %v159 = vld [vmem:[%s3 + $0x8] sm:$0xf]
    %v160 = vld [vmem:[%s3 + $0xc] sm:$0xf]
    %v161 = vld [vmem:[%s3 + $0x10] sm:$0xf]
    %v162 = vld [vmem:[%s3 + $0x14] sm:$0xf]
    %v163 = vld [vmem:[%s3 + $0x18] sm:$0xf]
    %v164 = vld [vmem:[%s3 + $0x1c] sm:$0xf]
    %v165 = vld [vmem:[%s3 + $0x20] sm:$0xf]
    %v166 = vld [vmem:[%s3 + $0x24] sm:$0xf]
    %v167 = vld [vmem:[%s3 + $0x28] sm:$0xf]
    %v168 = vld [vmem:[%s3 + $0x2c] sm:$0xf]
    %v169 = vld [vmem:[%s4] sm:$0x1]
    %v171 = vperm.slane %v169, 0
    %v185 = vunpack.c.l.b16 %v157
    %v186 = vunpack.c.l.b16 %v158
    %v187 = vunpack.c.l.b16 %v159
    %v188 = vunpack.c.l.b16 %v160
    %v189 = vunpack.c.l.b16 %v161
    %v190 = vunpack.c.l.b16 %v162
    %v191 = vunpack.c.l.b16 %v163
    %v192 = vunpack.c.l.b16 %v164
    %v193 = vunpack.c.l.b16 %v165
    %v194 = vunpack.c.l.b16 %v166
    %v195 = vunpack.c.l.b16 %v167
    %v196 = vunpack.c.l.b16 %v168
    %v197 = vpack.c.b16 %v186, %v185
    %v198 = vpack.c.b16 %v188, %v187
    %v199 = vpack.c.b16 %v190, %v189
    %v200 = vpack.c.b16 %v192, %v191
    %v201 = vpack.c.b16 %v194, %v193
    %v202 = vpack.c.b16 %v196, %v195
    %vm209 = vcmask 785408
    %v211 = vsel %vm209, %v156, 0
    %213 = vmatpush.bf16.msra.mxu0 0
    %214 = vmatpush.bf16.msra.mxu0 0
    %215 = vmatpush.bf16.msra.mxu0 %v202
    %216 = vmatpush.bf16.msra.mxu0 %v201
    %217 = vmatpush.bf16.msra.mxu0 %v200
    %218 = vmatpush.bf16.msra.mxu0 %v199
    %219 = vmatpush.bf16.msra.mxu0 %v198
    %220 = vmatpush.bf16.msra.mxu0 %v197
    %221 = vmatmul.bf16.gmra.mxu0 %v211
    %v222 = vpop.f32.mrf.mxu0
    %v223 = vadd.f32 %v171, %v222
    %v224 = vpop.f32.mrf.mxu0
    %225 = vdwg.mxu0
    %v226 = vmax.f32 %v223, 0.0
    %v227 = vpack.c.bf16 %v226, %v226
    %v228 = vld [vmem:[#allocation2] sm:$0xf]
    %v229 = vld [vmem:[#allocation2 + $0x4] sm:$0xf]
    %v230 = vld [vmem:[#allocation2 + $0x8] sm:$0xf]
    %v231 = vld [vmem:[#allocation2 + $0xc] sm:$0xf]
    %v232 = vld [vmem:[#allocation2 + $0x10] sm:$0xf]
    %v233 = vld [vmem:[#allocation2 + $0x14] sm:$0xf]
    %v234 = vld [vmem:[#allocation2 + $0x18] sm:$0xf]
    %v235 = vld [vmem:[#allocation2 + $0x1c] sm:$0xf]
    %v236 = vld [vmem:[%s6] sm:$0x1]
    %v238 = vperm.slane %v236, 0
    %v248 = vunpack.c.l.b16 %v228
    %v249 = vunpack.c.l.b16 %v229
    %v250 = vunpack.c.l.b16 %v230
    %v251 = vunpack.c.l.b16 %v231
    %v252 = vunpack.c.l.b16 %v232
    %v253 = vunpack.c.l.b16 %v233
    %v254 = vunpack.c.l.b16 %v234
    %v255 = vunpack.c.l.b16 %v235
    %v256 = vpack.c.b16 %v249, %v248
    %v257 = vpack.c.b16 %v251, %v250
    %v258 = vpack.c.b16 %v253, %v252
    %v259 = vpack.c.b16 %v255, %v254
    %vm264 = vcmask 523264
    %v266 = vsel %vm264, %v227, 0
    %268 = vmatpush.bf16.msra.mxu0 0
    %269 = vmatpush.bf16.msra.mxu0 0
    %270 = vmatpush.bf16.msra.mxu0 0
    %271 = vmatpush.bf16.msra.mxu0 0
    %272 = vmatpush.bf16.msra.mxu0 %v259
    %273 = vmatpush.bf16.msra.mxu0 %v258
    %274 = vmatpush.bf16.msra.mxu0 %v257
    %275 = vmatpush.bf16.msra.mxu0 %v256
    %276 = vmatmul.bf16.gmra.mxu0 %v266
    %v277 = vpop.f32.mrf.mxu0
    %v278 = vadd.f32 %v238, %v277
    %v279 = vpop.f32.mrf.mxu0
    %280 = vdwg.mxu0
    %281 = vst [vmem:[#allocation5] sm:$0x3] %v278
    // Predicated region
    $region34: #{tpu_custom_call.1} parent=1 // pred_check
      _
    $region35: #{tpu_custom_call.1} parent=1 // pred_check_branch
      %283 = sbr.rel (0) target = $region37
    $region36: #{tpu_custom_call.1} parent=1 // pred_region
      %285 = vsyncadd [#allocation4], 0
      %s287 = sshll.u32 [#allocation5], 4
      %s288 = int_to_ptr.vmem [resolvable:$true] %s287
      %s289 = sshll.u32 %s7, 4
      %s290 = int_to_ptr.hbm [resolvable:$true] %s289
      %292 = dma.vmem_to_hbm [thread:$0]  %s288, 32, %s290, [#allocation4]
    $region37: #{tpu_custom_call.1} parent=1 // pred_fallthru
      _
    // Predicated region
    $region38: #{tpu_custom_call.1} parent=1 // pred_check
      _
    $region39: #{tpu_custom_call.1} parent=1 // pred_check_branch
      %294 = sbr.rel (0) target = $region41
    $region40: #{tpu_custom_call.1} parent=1 // pred_region
      %296 = dma.done [#allocation4], 32
    $region41: #{tpu_custom_call.1} parent=1 // pred_fallthru
      _
    %297 = vsyncpa [#allocation3], 1
    %298 = vsyncpa [#allocation4], 1

</llo_original>
